<compile_context>
chip_gen: v6e
topology: v6e:2x2x1
jax: 0.10.0
libtpu: 0.0.40
codegen_flags: <defaults>
</compile_context>

<pallas_src>
import functools

import numpy as np
import jax
import jax.numpy as jnp
from jax.experimental import pallas as pl
from jax.experimental.pallas import tpu as pltpu


_VMEM_LIMIT = 32 * 1024 * 1024


# ----------------------------------------------------------------------------
# host-side helpers
# ----------------------------------------------------------------------------
def _round_up(x, m):
    return ((x + m - 1) // m) * m


def _pick_row_tile(m, max_tm=1024):
    """Largest row tile <= max_tm that divides m and is a multiple of 8
    (full extent if m <= max_tm)."""
    if m <= max_tm:
        return m
    for tm in range(max_tm, 7, -8):
        if m % tm == 0:
            return tm
    return m


def _pick_group_rows(r, wi, wo, kron_budget_bytes=1 << 20, row_budget=2048):
    """H-rows per grid step for the stage+W-resize kernel.

    g must divide r; (g*wi, g*wo) must be multiples of 8 unless g == r
    (full-extent blocks are always legal); kron(I_g, A_w) stays small."""
    cap_rows = max(1, row_budget // max(wi, 1))
    cap_kron = max(1, int((kron_budget_bytes / (2.0 * max(wo * wi, 1))) ** 0.5))
    max_g = max(1, min(r, cap_rows, cap_kron))
    for g in range(max_g, 0, -1):
        if r % g == 0 and (g * wi) % 8 == 0 and (g * wo) % 8 == 0:
            return g
    return r


def _pick_h_tile(ho, row_bytes, budget_bytes=1 << 20):
    """Output-H tile for the fused sum kernel: divides ho, multiple of 8 (or ho)."""
    max_tb = max(1, min(ho, budget_bytes // max(row_bytes, 1)))
    for tb in range(max_tb, 0, -1):
        if ho % tb == 0 and (tb % 8 == 0 or tb == ho):
            return tb
    return ho


@functools.lru_cache(maxsize=None)
def _bilinear_matrix(in_size, out_size):
    """PyTorch align_corners=False bilinear interpolation matrix (out, in)."""
    o = np.arange(out_size, dtype=np.float64)
    scale = in_size / out_size
    src = np.maximum((o + 0.5) * scale - 0.5, 0.0)
    i0 = np.clip(np.floor(src).astype(np.int64), 0, in_size - 1)
    i1 = np.minimum(i0 + 1, in_size - 1)
    w1 = (src - i0).astype(np.float32)
    w0 = (1.0 - w1).astype(np.float32)
    a = np.zeros((out_size, in_size), np.float32)
    rows = np.arange(out_size)
    np.add.at(a, (rows, i0), w0)
    np.add.at(a, (rows, i1), w1)
    return a


@functools.lru_cache(maxsize=None)
def _kron_identity_aw(g, in_size, out_size):
    """Block-diagonal W-axis resize operator for g independent H-rows."""
    a = _bilinear_matrix(in_size, out_size)
    return np.kron(np.eye(g, dtype=np.float32), a)


# ----------------------------------------------------------------------------
# Kernel 1a: conv1x1 + folded eval-BN + ReLU, then @ W1_i  (identity stages)
# ----------------------------------------------------------------------------
def _stage_kernel(x_ref, wc_ref, bc_ref, w1_ref, o_ref):
    t = jnp.dot(x_ref[...], wc_ref[...], preferred_element_type=jnp.float32)
    t = jnp.maximum(t + bc_ref[...], 0.0).astype(jnp.bfloat16)
    z = jnp.dot(t, w1_ref[...], preferred_element_type=jnp.float32)
    o_ref[...] = z.astype(o_ref.dtype)


def stage_project(x2d, wc, bc, w1, *, max_tm=1024):
    """relu(x @ wc + bc) @ w1 ; x2d:(M,C) bf16 -> (M,E) bf16."""
    m, c = x2d.shape
    e = wc.shape[1]
    tm = _pick_row_tile(m, max_tm)
    return pl.pallas_call(
        _stage_kernel,
        out_shape=jax.ShapeDtypeStruct((m, e), jnp.bfloat16),
        grid_spec=pltpu.PrefetchScalarGridSpec(
            num_scalar_prefetch=0,
            grid=(m // tm,),
            in_specs=[
                pl.BlockSpec((tm, c), lambda i: (i, 0)),
                pl.BlockSpec((c, e), lambda i: (0, 0)),
                pl.BlockSpec((1, e), lambda i: (0, 0)),
                pl.BlockSpec((e, e), lambda i: (0, 0)),
            ],
            out_specs=pl.BlockSpec((tm, e), lambda i: (i, 0)),
        ),
        compiler_params=pltpu.CompilerParams(
            dimension_semantics=("parallel",),
            vmem_limit_bytes=_VMEM_LIMIT),
    )(x2d, wc, bc.reshape(1, e), w1)


# ----------------------------------------------------------------------------
# Kernel 1b: same as 1a plus fused W-axis bilinear resize at native H
# ----------------------------------------------------------------------------
def _stage_resize_kernel(x_ref, wc_ref, bc_ref, w1_ref, kaw_ref, o_ref):
    t = jnp.dot(x_ref[...], wc_ref[...], preferred_element_type=jnp.float32)
    t = jnp.maximum(t + bc_ref[...], 0.0).astype(jnp.bfloat16)
    z = jnp.dot(t, w1_ref[...],
                preferred_element_type=jnp.float32).astype(jnp.bfloat16)
    up = jnp.dot(kaw_ref[...], z, preferred_element_type=jnp.float32)
    o_ref[...] = up.astype(o_ref.dtype)


def stage_project_resize_w(x2d, wc, bc, w1, *, rows, wi, wo):
    """relu(x @ wc + bc) @ w1, then W-axis bilinear resize (wi -> wo) per H-row.

    x2d: (rows*wi, C) bf16, rows = N*hi ; returns (rows*wo, E) bf16."""
    m, c = x2d.shape
    e = wc.shape[1]
    g = _pick_group_rows(rows, wi, wo)
    kaw = jnp.asarray(_kron_identity_aw(g, wi, wo), dtype=jnp.bfloat16)
    return pl.pallas_call(
        _stage_resize_kernel,
        out_shape=jax.ShapeDtypeStruct((rows * wo, e), jnp.bfloat16),
        grid_spec=pltpu.PrefetchScalarGridSpec(
            num_scalar_prefetch=0,
            grid=(rows // g,),
            in_specs=[
                pl.BlockSpec((g * wi, c), lambda i: (i, 0)),
                pl.BlockSpec((c, e), lambda i: (0, 0)),
                pl.BlockSpec((1, e), lambda i: (0, 0)),
                pl.BlockSpec((e, e), lambda i: (0, 0)),
                pl.BlockSpec((g * wo, g * wi), lambda i: (0, 0)),
            ],
            out_specs=pl.BlockSpec((g * wo, e), lambda i: (i, 0)),
        ),
        compiler_params=pltpu.CompilerParams(
            dimension_semantics=("parallel",),
            vmem_limit_bytes=_VMEM_LIMIT),
    )(x2d, wc, bc.reshape(1, e), w1, kaw)


# ----------------------------------------------------------------------------
# Kernel 2: fused H-axis resize + sum over stages + b1 + ReLU
#   hidden(N, Ho, Wo*E) = relu( sum_i upsample_i(z_i) + b1 )
#   identity stages stream as (1, TB, Wo*E) blocks; resized stages stay
#   resident per batch element as (1, Hi, Wo*E) and contribute via a
#   (TB, Hi) @ (Hi, Wo*E) matmul with the bf16 H-interp matrix.
# ----------------------------------------------------------------------------
def _make_fuse_sum_kernel(num_ident, num_resize):
    def kernel(*refs):
        o_ref = refs[-1]
        in_refs = refs[:-1]
        pos = 0
        acc = None
        for _ in range(num_ident):
            v = in_refs[pos][0].astype(jnp.float32)            # (TB, Wo*E)
            pos += 1
            acc = v if acc is None else acc + v
        for _ in range(num_resize):
            zw_ref = in_refs[pos]                               # (1, Hi, Wo*E)
            ah_ref = in_refs[pos + 1]                           # (TB, Hi)
            pos += 2
            contrib = jnp.dot(ah_ref[...], zw_ref[0],
                              preferred_element_type=jnp.float32)
            acc = contrib if acc is None else acc + contrib
        b1_ref = in_refs[pos]                                   # (1, Wo*E)
        h = jnp.maximum(acc + b1_ref[...], 0.0)
        o_ref[0] = h.astype(o_ref.dtype)
    return kernel


def fuse_sum(ident_maps, resize_maps, b1, n, ho, wo, e):
    """ident_maps: list of (N, Ho, Wo*E) bf16 maps already at target size.
    resize_maps: list of ((N, Hi, Wo*E) bf16, (Ho, Hi) bf16 H-interp matrix)."""
    woe = wo * e
    tb = _pick_h_tile(ho, 2 * woe)
    args, in_specs = [], []
    for z in ident_maps:
        args.append(z)
        in_specs.append(pl.BlockSpec((1, tb, woe), lambda b, t: (b, t, 0)))
    for zw, ah in resize_maps:
        hi = zw.shape[1]
        args.append(zw)
        in_specs.append(pl.BlockSpec((1, hi, woe), lambda b, t: (b, 0, 0)))
        args.append(ah)
        in_specs.append(pl.BlockSpec((tb, hi), lambda b, t: (t, 0)))
    args.append(jnp.tile(b1, wo).reshape(1, woe))
    in_specs.append(pl.BlockSpec((1, woe), lambda b, t: (0, 0)))
    kernel = _make_fuse_sum_kernel(len(ident_maps), len(resize_maps))
    return pl.pallas_call(
        kernel,
        out_shape=jax.ShapeDtypeStruct((n, ho, woe), jnp.bfloat16),
        grid_spec=pltpu.PrefetchScalarGridSpec(
            num_scalar_prefetch=0,
            grid=(n, ho // tb),
            in_specs=in_specs,
            out_specs=pl.BlockSpec((1, tb, woe), lambda b, t: (b, t, 0)),
        ),
        compiler_params=pltpu.CompilerParams(
            dimension_semantics=("parallel", "arbitrary"),
            vmem_limit_bytes=_VMEM_LIMIT),
    )(*args)


# ----------------------------------------------------------------------------
# Kernel 3: classifier  logits = hidden @ W2 + b2   (num_classes lane-padded)
# ----------------------------------------------------------------------------
def _classifier_kernel(h_ref, w2_ref, b2_ref, o_ref):
    out = jnp.dot(h_ref[...], w2_ref[...], preferred_element_type=jnp.float32)
    o_ref[...] = (out + b2_ref[...]).astype(o_ref.dtype)


def classifier(h2d, w2p, b2p, *, max_tm=1024):
    m, e = h2d.shape
    cp = w2p.shape[1]
    tm = _pick_row_tile(m, max_tm)
    return pl.pallas_call(
        _classifier_kernel,
        out_shape=jax.ShapeDtypeStruct((m, cp), jnp.float32),
        grid_spec=pltpu.PrefetchScalarGridSpec(
            num_scalar_prefetch=0,
            grid=(m // tm,),
            in_specs=[
                pl.BlockSpec((tm, e), lambda i: (i, 0)),
                pl.BlockSpec((e, cp), lambda i: (0, 0)),
                pl.BlockSpec((1, cp), lambda i: (0, 0)),
            ],
            out_specs=pl.BlockSpec((tm, cp), lambda i: (i, 0)),
        ),
        compiler_params=pltpu.CompilerParams(
            dimension_semantics=("parallel",),
            vmem_limit_bytes=_VMEM_LIMIT),
    )(h2d, w2p, b2p.reshape(1, cp))


# ----------------------------------------------------------------------------
# Parameters (deterministic, eval-mode BN folded into conv, bf16 weights)
# ----------------------------------------------------------------------------
def init_params(key, dims, embed_dim, num_classes):
    eps = 1e-5
    params = {"embed_dim": embed_dim, "num_classes": num_classes,
              "stage_w": [], "stage_b": []}
    for d in dims:
        key, k1, k2, k3, k4, k5, k6 = jax.random.split(key, 7)
        w = jax.random.normal(k1, (d, embed_dim), jnp.float32) * (0.5 / d ** 0.5)
        b = 0.1 * jax.random.normal(k2, (embed_dim,), jnp.float32)
        gamma = 1.0 + 0.1 * jax.random.normal(k3, (embed_dim,), jnp.float32)
        beta = 0.1 * jax.random.normal(k4, (embed_dim,), jnp.float32)
        rmean = 0.1 * jax.random.normal(k5, (embed_dim,), jnp.float32)
        rvar = 1.0 + 0.1 * jnp.abs(jax.random.normal(k6, (embed_dim,), jnp.float32))
        scale = gamma / jnp.sqrt(rvar + eps)
        params["stage_w"].append((w * scale[None, :]).astype(jnp.bfloat16))
        params["stage_b"].append((b - rmean) * scale + beta)          # f32
    key, k1, k2, k3, k4 = jax.random.split(key, 5)
    w1 = jax.random.normal(k1, (4 * embed_dim, embed_dim), jnp.float32) * (
        0.5 / (4 * embed_dim) ** 0.5)
    params["fuse_w1_blocks"] = tuple(
        w1[j * embed_dim:(j + 1) * embed_dim].astype(jnp.bfloat16)
        for j in range(4))
    params["fuse_b1"] = 0.1 * jax.random.normal(k2, (embed_dim,), jnp.float32)
    w2 = jax.random.normal(k3, (embed_dim, num_classes), jnp.float32) * (
        0.5 / embed_dim ** 0.5)
    b2 = 0.1 * jax.random.normal(k4, (num_classes,), jnp.float32)
    cp = _round_up(num_classes, 128)
    params["fuse_w2p"] = jnp.pad(
        w2, ((0, 0), (0, cp - num_classes))).astype(jnp.bfloat16)
    params["fuse_b2p"] = jnp.pad(b2, ((0, cp - num_classes),))         # f32
    return params


# ----------------------------------------------------------------------------
# Forward pass (matches SegFormerHead.forward, eval-mode BN)
# ----------------------------------------------------------------------------
def segformer_head_forward(feats_nchw, params, target_size):
    ho, wo = target_size
    n = feats_nchw[0].shape[0]
    e = params["embed_dim"]

    ident_maps, resize_maps = [], []
    for i, feat in enumerate(feats_nchw):
        # NCHW -> NHWC + cast to bf16 (single fused XLA pass).
        x = jnp.transpose(feat, (0, 2, 3, 1)).astype(jnp.bfloat16)
        _, hi, wi, ci = x.shape
        wc, bc = params["stage_w"][i], params["stage_b"][i]
        w1 = params["fuse_w1_blocks"][i]
        x2d = x.reshape(n * hi * wi, ci)

        if (hi, wi) == (ho, wo):
            # Resize to the same size is the identity -> skip it entirely.
            z = stage_project(x2d, wc, bc, w1)                  # (N*Ho*Wo, E)
            ident_maps.append(z.reshape(n, ho, wo * e))
        else:
            # conv+BN+ReLU+W1 and W-axis resize at NATIVE resolution.
            zw = stage_project_resize_w(x2d, wc, bc, w1,
                                        rows=n * hi, wi=wi, wo=wo)
            ah = jnp.asarray(_bilinear_matrix(hi, ho), jnp.bfloat16)  # (Ho, Hi)
            resize_maps.append((zw.reshape(n, hi, wo * e), ah))

    # H-axis resize + sum over stages + b1 + ReLU, all in one kernel.
    hidden = fuse_sum(ident_maps, resize_maps, params["fuse_b1"], n, ho, wo, e)

    # Final 1x1 conv (classifier).
    logits = classifier(hidden.reshape(n * ho * wo, e),
                        params["fuse_w2p"], params["fuse_b2p"])
    c = params["num_classes"]
    out = logits[:, :c].reshape(n, ho, wo, c)
    return jnp.transpose(out, (0, 3, 1, 2))                    # back to NCHW


# ----------------------------------------------------------------------------
if __name__ == "__main__":
    key = jax.random.PRNGKey(0)
    dims = [8, 16, 24, 32]          # small stand-ins for [64, 128, 320, 512]
    embed_dim = 32                  # small stand-in for 256
    num_classes = 1
    N = 2
    spatials = [(16, 16), (8, 8), (4, 4), (2, 2)]
    target_size = (16, 16)

    pkey, dkey = jax.random.split(key)
    params = init_params(pkey, dims, embed_dim, num_classes)

    feats = []
    for d, (h, w) in zip(dims, spatials):
        dkey, sub = jax.random.split(dkey)
        feats.append(jax.random.normal(sub, (N, d, h, w), jnp.float32))  # NCHW

    out = segformer_head_forward(feats, params, target_size)
    out = jax.block_until_ready(out)
    assert out.shape == (N, num_classes, target_size[0], target_size[1]), out.shape
    assert bool(jnp.all(jnp.isfinite(out)))
    print("KERNEL_OK")
</pallas_src>

<mosaic_0001>
module attributes {stable_mosaic.version = 11 : i64} {
  func.func @_stage_kernel(%arg0: i32, %arg1: memref<512x8xbf16, #tpu.memory_space<vmem>>, %arg2: memref<8x32xbf16, #tpu.memory_space<vmem>>, %arg3: memref<1x32xf32, #tpu.memory_space<vmem>>, %arg4: memref<32x32xbf16, #tpu.memory_space<vmem>>, %arg5: memref<512x32xbf16, #tpu.memory_space<vmem>>) attributes {dimension_semantics = [#tpu.dimension_semantics<parallel>], iteration_bounds = array<i64: 1>, scalar_prefetch = 0 : i64, scratch_operands = 0 : i64, tpu.core_type = #tpu.core_type<tc>, window_params = [{transform_indices = @transform_0, window_bounds = array<i64: 512, 8>}, {pipeline_mode = #tpu.pipeline_mode<synchronous>, transform_indices = @transform_1, window_bounds = array<i64: 8, 32>}, {pipeline_mode = #tpu.pipeline_mode<synchronous>, transform_indices = @transform_2, window_bounds = array<i64: 1, 32>}, {pipeline_mode = #tpu.pipeline_mode<synchronous>, transform_indices = @transform_3, window_bounds = array<i64: 32, 32>}, {transform_indices = @transform_4, window_bounds = array<i64: 512, 32>}]} {
    %c0 = arith.constant 0 : index
    %c0_0 = arith.constant 0 : index
    %0 = vector.load %arg1[%c0, %c0_0] : memref<512x8xbf16, #tpu.memory_space<vmem>>, vector<512x8xbf16>
    %c0_1 = arith.constant 0 : index
    %c0_2 = arith.constant 0 : index
    %1 = vector.load %arg2[%c0_1, %c0_2] : memref<8x32xbf16, #tpu.memory_space<vmem>>, vector<8x32xbf16>
    %cst = arith.constant dense<0.000000e+00> : vector<512x32xf32>
    %2 = tpu.matmul %0, %1, %cst {dimension_numbers = #tpu.dot_dimension_numbers<[1], [0], [0], [1], [0, 0, 1, 1], [], []>} : vector<512x8xbf16>, vector<8x32xbf16>, vector<512x32xf32> -> vector<512x32xf32>
    %c0_3 = arith.constant 0 : index
    %c0_4 = arith.constant 0 : index
    %3 = vector.load %arg3[%c0_3, %c0_4] : memref<1x32xf32, #tpu.memory_space<vmem>>, vector<1x32xf32>
    %4 = vector.broadcast %3 : vector<1x32xf32> to vector<512x32xf32>
    %5 = arith.addf %2, %4 : vector<512x32xf32>
    %cst_5 = arith.constant 0.000000e+00 : f32
    %6 = vector.broadcast %cst_5 : f32 to vector<512x32xf32>
    %7 = arith.maximumf %5, %6 : vector<512x32xf32>
    %8 = arith.truncf %7 : vector<512x32xf32> to vector<512x32xbf16>
    %c0_6 = arith.constant 0 : index
    %c0_7 = arith.constant 0 : index
    %9 = vector.load %arg4[%c0_6, %c0_7] : memref<32x32xbf16, #tpu.memory_space<vmem>>, vector<32x32xbf16>
    %cst_8 = arith.constant dense<0.000000e+00> : vector<512x32xf32>
    %10 = tpu.matmul %8, %9, %cst_8 {dimension_numbers = #tpu.dot_dimension_numbers<[1], [0], [0], [1], [0, 0, 1, 1], [], []>} : vector<512x32xbf16>, vector<32x32xbf16>, vector<512x32xf32> -> vector<512x32xf32>
    %11 = arith.truncf %10 : vector<512x32xf32> to vector<512x32xbf16>
    %c0_9 = arith.constant 0 : index
    %c0_10 = arith.constant 0 : index
    %12 = vector.load %arg5[%c0_9, %c0_10] : memref<512x32xbf16, #tpu.memory_space<vmem>>, vector<512x32xbf16>
    tpu.vector_store %arg5[%c0_9, %c0_10], %11 {strides = array<i32>} : memref<512x32xbf16, #tpu.memory_space<vmem>>, vector<512x32xbf16>,
    return
  }
  func.func @transform_0(%arg0: i32) -> (i32, i32) {
    %c0_i32 = arith.constant 0 : i32
    %c0_i32_0 = arith.constant 0 : i32
    return %arg0, %c0_i32 : i32, i32
  }
  func.func @transform_1(%arg0: i32) -> (i32, i32) {
    %c0_i32 = arith.constant 0 : i32
    %c0_i32_0 = arith.constant 0 : i32
    %c0_i32_1 = arith.constant 0 : i32
    return %c0_i32, %c0_i32_0 : i32, i32
  }
  func.func @transform_2(%arg0: i32) -> (i32, i32) {
    %c0_i32 = arith.constant 0 : i32
    %c0_i32_0 = arith.constant 0 : i32
    %c0_i32_1 = arith.constant 0 : i32
    return %c0_i32, %c0_i32_0 : i32, i32
  }
  func.func @transform_3(%arg0: i32) -> (i32, i32) {
    %c0_i32 = arith.constant 0 : i32
    %c0_i32_0 = arith.constant 0 : i32
    %c0_i32_1 = arith.constant 0 : i32
    return %c0_i32, %c0_i32_0 : i32, i32
  }
  func.func @transform_4(%arg0: i32) -> (i32, i32) {
    %c0_i32 = arith.constant 0 : i32
    %c0_i32_0 = arith.constant 0 : i32
    return %arg0, %c0_i32 : i32, i32
  }
}

</mosaic_0001>

<llo_original>
// kernel: tpu_custom_call.1
$region0: #{tpu_custom_call.1}
  #allocation0 [shape = 'u32[]', space=smem, size = 0x4, offset = 0x4, fixed_abs, tag = 'smem constant byte address 0x4 - core index']
  #allocation1 [shape = 'u32[144,128]{1,0:T(1,128)}', space=vmem, size = 0x12000, scoped, tag = 'internal scratch']
  %s0 = inlined_call_operand.vmem [shape: bf16[512,8], index: 0, kind: input, shape index: {}]
  %s1 = inlined_call_operand.vmem [shape: bf16[8,32], index: 1, kind: input, shape index: {}]
  %s2 = inlined_call_operand.vmem [shape: f32[1,32], index: 2, kind: input, shape index: {}]
  %s3 = inlined_call_operand.vmem [shape: bf16[32,32], index: 3, kind: input, shape index: {}]
  %s4 = inlined_call_operand.vmem [shape: bf16[512,32], index: 4, kind: output, shape index: {}]
  %s5 = sld [smem:[#allocation0]]
  $region26: #{tpu_custom_call.1} parent=0
    _
  %s7 = ssub.s32 1, %s5
  %s8 = scalar_select 0, %s7, %s5
  // Predicated region
  $region2: #{tpu_custom_call.1} parent=0 // pred_check
    _
  $region3: #{tpu_custom_call.1} parent=0 // pred_check_branch
    %10 = sbr.rel (0) target = $region5
  $region4: #{tpu_custom_call.1} parent=0 // pred_region
    _
  $region5: #{tpu_custom_call.1} parent=0 // pred_fallthru
    _
  // Predicated region
  $region6: #{tpu_custom_call.1} parent=0 // pred_check
    _
  $region7: #{tpu_custom_call.1} parent=0 // pred_check_branch
    %12 = sbr.rel (0) target = $region9
  $region8: #{tpu_custom_call.1} parent=0 // pred_region
    _
  $region9: #{tpu_custom_call.1} parent=0 // pred_fallthru
    _
  // Predicated region
  $region10: #{tpu_custom_call.1} parent=0 // pred_check
    _
  $region11: #{tpu_custom_call.1} parent=0 // pred_check_branch
    %14 = sbr.rel (0) target = $region13
  $region12: #{tpu_custom_call.1} parent=0 // pred_region
    _
  $region13: #{tpu_custom_call.1} parent=0 // pred_fallthru
    _
  // Predicated region
  $region14: #{tpu_custom_call.1} parent=0 // pred_check
    _
  $region15: #{tpu_custom_call.1} parent=0 // pred_check_branch
    %16 = sbr.rel (0) target = $region17
  $region16: #{tpu_custom_call.1} parent=0 // pred_region
    _
  $region17: #{tpu_custom_call.1} parent=0 // pred_fallthru
    _
  %v18 = vld [vmem:[%s0] sm:$0xf]
  %v19 = vld [vmem:[%s0 + $0x4] sm:$0xf]
  %v20 = vld [vmem:[%s0 + $0x8] sm:$0xf]
  %v21 = vld [vmem:[%s0 + $0xc] sm:$0xf]
  %v22 = vld [vmem:[%s0 + $0x10] sm:$0xf]
  %v23 = vld [vmem:[%s0 + $0x14] sm:$0xf]
  %v24 = vld [vmem:[%s0 + $0x18] sm:$0xf]
  %v25 = vld [vmem:[%s0 + $0x1c] sm:$0xf]
  %v26 = vld [vmem:[%s0 + $0x20] sm:$0xf]
  %v27 = vld [vmem:[%s0 + $0x24] sm:$0xf]
  %v28 = vld [vmem:[%s0 + $0x28] sm:$0xf]
  %v29 = vld [vmem:[%s0 + $0x2c] sm:$0xf]
  %v30 = vld [vmem:[%s0 + $0x30] sm:$0xf]
  %v31 = vld [vmem:[%s0 + $0x34] sm:$0xf]
  %v32 = vld [vmem:[%s0 + $0x38] sm:$0xf]
  %v33 = vld [vmem:[%s0 + $0x3c] sm:$0xf]
  %v34 = vld [vmem:[%s0 + $0x40] sm:$0xf]
  %v35 = vld [vmem:[%s0 + $0x44] sm:$0xf]
  %v36 = vld [vmem:[%s0 + $0x48] sm:$0xf]
  %v37 = vld [vmem:[%s0 + $0x4c] sm:$0xf]
  %v38 = vld [vmem:[%s0 + $0x50] sm:$0xf]
  %v39 = vld [vmem:[%s0 + $0x54] sm:$0xf]
  %v40 = vld [vmem:[%s0 + $0x58] sm:$0xf]
  %v41 = vld [vmem:[%s0 + $0x5c] sm:$0xf]
  %v42 = vld [vmem:[%s0 + $0x60] sm:$0xf]
  %v43 = vld [vmem:[%s0 + $0x64] sm:$0xf]
  %v44 = vld [vmem:[%s0 + $0x68] sm:$0xf]
  %v45 = vld [vmem:[%s0 + $0x6c] sm:$0xf]
  %v46 = vld [vmem:[%s0 + $0x70] sm:$0xf]
  %v47 = vld [vmem:[%s0 + $0x74] sm:$0xf]
  %v48 = vld [vmem:[%s0 + $0x78] sm:$0xf]
  %v49 = vld [vmem:[%s0 + $0x7c] sm:$0xf]
  %v50 = vld [vmem:[%s0 + $0x80] sm:$0xf]
  %v51 = vld [vmem:[%s0 + $0x84] sm:$0xf]
  %v52 = vld [vmem:[%s0 + $0x88] sm:$0xf]
  %v53 = vld [vmem:[%s0 + $0x8c] sm:$0xf]
  %v54 = vld [vmem:[%s0 + $0x90] sm:$0xf]
  %v55 = vld [vmem:[%s0 + $0x94] sm:$0xf]
  %v56 = vld [vmem:[%s0 + $0x98] sm:$0xf]
  %v57 = vld [vmem:[%s0 + $0x9c] sm:$0xf]
  %v58 = vld [vmem:[%s0 + $0xa0] sm:$0xf]
  %v59 = vld [vmem:[%s0 + $0xa4] sm:$0xf]
  %v60 = vld [vmem:[%s0 + $0xa8] sm:$0xf]
  %v61 = vld [vmem:[%s0 + $0xac] sm:$0xf]
  %v62 = vld [vmem:[%s0 + $0xb0] sm:$0xf]
  %v63 = vld [vmem:[%s0 + $0xb4] sm:$0xf]
  %v64 = vld [vmem:[%s0 + $0xb8] sm:$0xf]
  %v65 = vld [vmem:[%s0 + $0xbc] sm:$0xf]
  %v66 = vld [vmem:[%s0 + $0xc0] sm:$0xf]
  %v67 = vld [vmem:[%s0 + $0xc4] sm:$0xf]
  %v68 = vld [vmem:[%s0 + $0xc8] sm:$0xf]
  %v69 = vld [vmem:[%s0 + $0xcc] sm:$0xf]
  %v70 = vld [vmem:[%s0 + $0xd0] sm:$0xf]
  %v71 = vld [vmem:[%s0 + $0xd4] sm:$0xf]
  %v72 = vld [vmem:[%s0 + $0xd8] sm:$0xf]
  %v73 = vld [vmem:[%s0 + $0xdc] sm:$0xf]
  %v74 = vld [vmem:[%s0 + $0xe0] sm:$0xf]
  %v75 = vld [vmem:[%s0 + $0xe4] sm:$0xf]
  %v76 = vld [vmem:[%s0 + $0xe8] sm:$0xf]
  %v77 = vld [vmem:[%s0 + $0xec] sm:$0xf]
  %v78 = vld [vmem:[%s0 + $0xf0] sm:$0xf]
  %v79 = vld [vmem:[%s0 + $0xf4] sm:$0xf]
  %v80 = vld [vmem:[%s0 + $0xf8] sm:$0xf]
  %v81 = vld [vmem:[%s0 + $0xfc] sm:$0xf]
  %v82 = vld [vmem:[%s1] sm:$0xf]
  %v83 = vld [vmem:[%s2] sm:$0x1]
  %v85 = vlaneseq
  %v86 = vshrl.u32 %v85, 7
  %v87 = vsub.s32 0, %v86
  %v88 = vrot.slane %v83, %v87
  %v154 = vunpack.c.l.b16 %v18
  %v155 = vunpack.c.l.b16 %v19
  %v156 = vunpack.c.l.b16 %v20
  %v157 = vunpack.c.l.b16 %v21
  %v158 = vunpack.c.l.b16 %v22
  %v159 = vunpack.c.l.b16 %v23
  %v160 = vunpack.c.l.b16 %v24
  %v161 = vunpack.c.l.b16 %v25
  %v162 = vunpack.c.l.b16 %v26
  %v163 = vunpack.c.l.b16 %v27
  %v164 = vunpack.c.l.b16 %v28
  %v165 = vunpack.c.l.b16 %v29
  %v166 = vunpack.c.l.b16 %v30
  %v167 = vunpack.c.l.b16 %v31
  %v168 = vunpack.c.l.b16 %v32
  %v169 = vunpack.c.l.b16 %v33
  %v170 = vunpack.c.l.b16 %v34
  %v171 = vunpack.c.l.b16 %v35
  %v172 = vunpack.c.l.b16 %v36
  %v173 = vunpack.c.l.b16 %v37
  %v174 = vunpack.c.l.b16 %v38
  %v175 = vunpack.c.l.b16 %v39
  %v176 = vunpack.c.l.b16 %v40
  %v177 = vunpack.c.l.b16 %v41
  %v178 = vunpack.c.l.b16 %v42
  %v179 = vunpack.c.l.b16 %v43
  %v180 = vunpack.c.l.b16 %v44
  %v181 = vunpack.c.l.b16 %v45
  %v182 = vunpack.c.l.b16 %v46
  %v183 = vunpack.c.l.b16 %v47
  %v184 = vunpack.c.l.b16 %v48
  %v185 = vunpack.c.l.b16 %v49
  %v186 = vunpack.c.l.b16 %v50
  %v187 = vunpack.c.l.b16 %v51
  %v188 = vunpack.c.l.b16 %v52
  %v189 = vunpack.c.l.b16 %v53
  %v190 = vunpack.c.l.b16 %v54
  %v191 = vunpack.c.l.b16 %v55
  %v192 = vunpack.c.l.b16 %v56
  %v193 = vunpack.c.l.b16 %v57
  %v194 = vunpack.c.l.b16 %v58
  %v195 = vunpack.c.l.b16 %v59
  %v196 = vunpack.c.l.b16 %v60
  %v197 = vunpack.c.l.b16 %v61
  %v198 = vunpack.c.l.b16 %v62
  %v199 = vunpack.c.l.b16 %v63
  %v200 = vunpack.c.l.b16 %v64
  %v201 = vunpack.c.l.b16 %v65
  %v202 = vunpack.c.l.b16 %v66
  %v203 = vunpack.c.l.b16 %v67
  %v204 = vunpack.c.l.b16 %v68
  %v205 = vunpack.c.l.b16 %v69
  %v206 = vunpack.c.l.b16 %v70
  %v207 = vunpack.c.l.b16 %v71
  %v208 = vunpack.c.l.b16 %v72
  %v209 = vunpack.c.l.b16 %v73
  %v210 = vunpack.c.l.b16 %v74
  %v211 = vunpack.c.l.b16 %v75
  %v212 = vunpack.c.l.b16 %v76
  %v213 = vunpack.c.l.b16 %v77
  %v214 = vunpack.c.l.b16 %v78
  %v215 = vunpack.c.l.b16 %v79
  %v216 = vunpack.c.l.b16 %v80
  %v217 = vunpack.c.l.b16 %v81
  %v218 = vpack.c.b16 %v155, %v154
  %v219 = vpack.c.b16 %v157, %v156
  %v220 = vpack.c.b16 %v159, %v158
  %v221 = vpack.c.b16 %v161, %v160
  %v222 = vpack.c.b16 %v163, %v162
  %v223 = vpack.c.b16 %v165, %v164
  %v224 = vpack.c.b16 %v167, %v166
  %v225 = vpack.c.b16 %v169, %v168
  %v226 = vpack.c.b16 %v171, %v170
  %v227 = vpack.c.b16 %v173, %v172
  %v228 = vpack.c.b16 %v175, %v174
  %v229 = vpack.c.b16 %v177, %v176
  %v230 = vpack.c.b16 %v179, %v178
  %v231 = vpack.c.b16 %v181, %v180
  %v232 = vpack.c.b16 %v183, %v182
  %v233 = vpack.c.b16 %v185, %v184
  %v234 = vpack.c.b16 %v187, %v186
  %v235 = vpack.c.b16 %v189, %v188
  %v236 = vpack.c.b16 %v191, %v190
  %v237 = vpack.c.b16 %v193, %v192
  %v238 = vpack.c.b16 %v195, %v194
  %v239 = vpack.c.b16 %v197, %v196
  %v240 = vpack.c.b16 %v199, %v198
  %v241 = vpack.c.b16 %v201, %v200
  %v242 = vpack.c.b16 %v203, %v202
  %v243 = vpack.c.b16 %v205, %v204
  %v244 = vpack.c.b16 %v207, %v206
  %v245 = vpack.c.b16 %v209, %v208
  %v246 = vpack.c.b16 %v211, %v210
  %v247 = vpack.c.b16 %v213, %v212
  %v248 = vpack.c.b16 %v215, %v214
  %v249 = vpack.c.b16 %v217, %v216
  %vm250 = vcmask 64512
  %v252 = vsel %vm250, %v218, 0
  %v255 = vsel %vm250, %v219, 0
  %v258 = vsel %vm250, %v220, 0
  %v261 = vsel %vm250, %v221, 0
  %v264 = vsel %vm250, %v222, 0
  %v267 = vsel %vm250, %v223, 0
  %v270 = vsel %vm250, %v224, 0
  %v273 = vsel %vm250, %v225, 0
  %v276 = vsel %vm250, %v226, 0
  %v279 = vsel %vm250, %v227, 0
  %v282 = vsel %vm250, %v228, 0
  %v285 = vsel %vm250, %v229, 0
  %v288 = vsel %vm250, %v230, 0
  %v291 = vsel %vm250, %v231, 0
  %v294 = vsel %vm250, %v232, 0
  %v297 = vsel %vm250, %v233, 0
  %v300 = vsel %vm250, %v234, 0
  %v303 = vsel %vm250, %v235, 0
  %v306 = vsel %vm250, %v236, 0
  %v309 = vsel %vm250, %v237, 0
  %v312 = vsel %vm250, %v238, 0
  %v315 = vsel %vm250, %v239, 0
  %v318 = vsel %vm250, %v240, 0
  %v321 = vsel %vm250, %v241, 0
  %v324 = vsel %vm250, %v242, 0
  %v327 = vsel %vm250, %v243, 0
  %v330 = vsel %vm250, %v244, 0
  %v333 = vsel %vm250, %v245, 0
  %v336 = vsel %vm250, %v246, 0
  %v339 = vsel %vm250, %v247, 0
  %v342 = vsel %vm250, %v248, 0
  %v345 = vsel %vm250, %v249, 0
  %vm347 = vcmask 1043456
  %v349 = vsel %vm347, %v82, 0
  %351 = vmatprep.subr.bf16.mxu0 0
  %352 = vmatpush1.bf16.msra.mxu0 0
  %353 = vmatprep.subr.bf16.mxu0 0
  %354 = vmatpush1.bf16.msra.mxu0 0
  %355 = vmatprep.subr.bf16.mxu0 0
  %356 = vmatpush1.bf16.msra.mxu0 0
  %357 = vmatprep.subr.bf16.mxu0 0
  %358 = vmatpush1.bf16.msra.mxu0 0
  %359 = vmatprep.subr.bf16.mxu0 0
  %360 = vmatpush1.bf16.msra.mxu0 0
  %361 = vmatprep.subr.bf16.mxu0 0
  %362 = vmatpush1.bf16.msra.mxu0 0
  %363 = vmatprep.subr.bf16.mxu0 0
  %364 = vmatpush1.bf16.msra.mxu0 0
  %365 = vmatprep.subr.bf16.mxu0 0
  %366 = vmatpush1.bf16.msra.mxu0 %v349
  %367 = vmatprep.subr.bf16.mxu0 0
  %368 = vmatpush2.bf16.msra.mxu0 0
  %369 = vmatprep.subr.bf16.mxu0 0
  %370 = vmatpush2.bf16.msra.mxu0 0
  %371 = vmatprep.subr.bf16.mxu0 0
  %372 = vmatpush2.bf16.msra.mxu0 0
  %373 = vmatprep.subr.bf16.mxu0 0
  %374 = vmatpush2.bf16.msra.mxu0 0
  %375 = vmatprep.subr.bf16.mxu0 0
  %376 = vmatpush2.bf16.msra.mxu0 0
  %377 = vmatprep.subr.bf16.mxu0 0
  %378 = vmatpush2.bf16.msra.mxu0 0
  %379 = vmatprep.subr.bf16.mxu0 0
  %380 = vmatpush2.bf16.msra.mxu0 0
  %381 = vmatprep.subr.bf16.mxu0 0
  %382 = vmatpush2.bf16.msra.mxu0 0
  %383 = vmatprep.mubr.bf16.mxu0 0
  %384 = vmatmul.mubr.bf16.gmra.mxu0 %v252
  %v385 = vpop.f32.mrf.mxu0
  %v386 = vadd.f32 %v88, %v385
  %v387 = vpop.f32.mrf.mxu0
  %v388 = vpop.f32.mrf.mxu0
  %v389 = vadd.f32 %v88, %v388
  %v390 = vpop.f32.mrf.mxu0
  %391 = vmatprep.mubr.bf16.mxu0 0
  %392 = vmatmul.mubr.bf16.gmra.mxu0 %v255
  %v393 = vpop.f32.mrf.mxu0
  %v394 = vadd.f32 %v88, %v393
  %v395 = vpop.f32.mrf.mxu0
  %v396 = vpop.f32.mrf.mxu0
  %v397 = vadd.f32 %v88, %v396
  %v398 = vpop.f32.mrf.mxu0
  %399 = vmatprep.mubr.bf16.mxu0 0
  %400 = vmatmul.mubr.bf16.gmra.mxu0 %v258
  %v401 = vpop.f32.mrf.mxu0
  %v402 = vadd.f32 %v88, %v401
  %v403 = vpop.f32.mrf.mxu0
  %v404 = vpop.f32.mrf.mxu0
  %v405 = vadd.f32 %v88, %v404
  %v406 = vpop.f32.mrf.mxu0
  %407 = vmatprep.mubr.bf16.mxu0 0
  %408 = vmatmul.mubr.bf16.gmra.mxu0 %v261
  %v409 = vpop.f32.mrf.mxu0
  %v410 = vadd.f32 %v88, %v409
  %v411 = vpop.f32.mrf.mxu0
  %v412 = vpop.f32.mrf.mxu0
  %v413 = vadd.f32 %v88, %v412
  %v414 = vpop.f32.mrf.mxu0
  %415 = vmatprep.mubr.bf16.mxu0 0
  %416 = vmatmul.mubr.bf16.gmra.mxu0 %v264
  %v417 = vpop.f32.mrf.mxu0
  %v418 = vadd.f32 %v88, %v417
  %v419 = vpop.f32.mrf.mxu0
  %v420 = vpop.f32.mrf.mxu0
  %v421 = vadd.f32 %v88, %v420
  %v422 = vpop.f32.mrf.mxu0
  %423 = vmatprep.mubr.bf16.mxu0 0
  %424 = vmatmul.mubr.bf16.gmra.mxu0 %v267
  %v425 = vpop.f32.mrf.mxu0
  %v426 = vadd.f32 %v88, %v425
  %v427 = vpop.f32.mrf.mxu0
  %v428 = vpop.f32.mrf.mxu0
  %v429 = vadd.f32 %v88, %v428
  %v430 = vpop.f32.mrf.mxu0
  %431 = vmatprep.mubr.bf16.mxu0 0
  %432 = vmatmul.mubr.bf16.gmra.mxu0 %v270
  %v433 = vpop.f32.mrf.mxu0
  %v434 = vadd.f32 %v88, %v433
  %v435 = vpop.f32.mrf.mxu0
  %v436 = vpop.f32.mrf.mxu0
  %v437 = vadd.f32 %v88, %v436
  %v438 = vpop.f32.mrf.mxu0
  %439 = vmatprep.mubr.bf16.mxu0 0
  %440 = vmatmul.mubr.bf16.gmra.mxu0 %v273
  %v441 = vpop.f32.mrf.mxu0
  %v442 = vadd.f32 %v88, %v441
  %v443 = vpop.f32.mrf.mxu0
  %v444 = vpop.f32.mrf.mxu0
  %v445 = vadd.f32 %v88, %v444
  %v446 = vpop.f32.mrf.mxu0
  %447 = vmatprep.mubr.bf16.mxu0 0
  %448 = vmatmul.mubr.bf16.gmra.mxu0 %v276
  %v449 = vpop.f32.mrf.mxu0
  %v450 = vadd.f32 %v88, %v449
  %v451 = vpop.f32.mrf.mxu0
  %v452 = vpop.f32.mrf.mxu0
  %v453 = vadd.f32 %v88, %v452
  %v454 = vpop.f32.mrf.mxu0
  %455 = vmatprep.mubr.bf16.mxu0 0
  %456 = vmatmul.mubr.bf16.gmra.mxu0 %v279
  %v457 = vpop.f32.mrf.mxu0
  %v458 = vadd.f32 %v88, %v457
  %v459 = vpop.f32.mrf.mxu0
  %v460 = vpop.f32.mrf.mxu0
  %v461 = vadd.f32 %v88, %v460
  %v462 = vpop.f32.mrf.mxu0
  %463 = vmatprep.mubr.bf16.mxu0 0
  %464 = vmatmul.mubr.bf16.gmra.mxu0 %v282
  %v465 = vpop.f32.mrf.mxu0
  %v466 = vadd.f32 %v88, %v465
  %v467 = vpop.f32.mrf.mxu0
  %v468 = vpop.f32.mrf.mxu0
  %v469 = vadd.f32 %v88, %v468
  %v470 = vpop.f32.mrf.mxu0
  %471 = vmatprep.mubr.bf16.mxu0 0
  %472 = vmatmul.mubr.bf16.gmra.mxu0 %v285
  %v473 = vpop.f32.mrf.mxu0
  %v474 = vadd.f32 %v88, %v473
  %v475 = vpop.f32.mrf.mxu0
  %v476 = vpop.f32.mrf.mxu0
  %v477 = vadd.f32 %v88, %v476
  %v478 = vpop.f32.mrf.mxu0
  %479 = vmatprep.mubr.bf16.mxu0 0
  %480 = vmatmul.mubr.bf16.gmra.mxu0 %v288
  %v481 = vpop.f32.mrf.mxu0
  %v482 = vadd.f32 %v88, %v481
  %v483 = vpop.f32.mrf.mxu0
  %v484 = vpop.f32.mrf.mxu0
  %v485 = vadd.f32 %v88, %v484
  %v486 = vpop.f32.mrf.mxu0
  %487 = vmatprep.mubr.bf16.mxu0 0
  %488 = vmatmul.mubr.bf16.gmra.mxu0 %v291
  %v489 = vpop.f32.mrf.mxu0
  %v490 = vadd.f32 %v88, %v489
  %v491 = vpop.f32.mrf.mxu0
  %v492 = vpop.f32.mrf.mxu0
  %v493 = vadd.f32 %v88, %v492
  %v494 = vpop.f32.mrf.mxu0
  %495 = vmatprep.mubr.bf16.mxu0 0
  %496 = vmatmul.mubr.bf16.gmra.mxu0 %v294
  %v497 = vpop.f32.mrf.mxu0
  %v498 = vadd.f32 %v88, %v497
  %v499 = vpop.f32.mrf.mxu0
  %v500 = vpop.f32.mrf.mxu0
  %v501 = vadd.f32 %v88, %v500
  %v502 = vpop.f32.mrf.mxu0
  %503 = vmatprep.mubr.bf16.mxu0 0
  %504 = vmatmul.mubr.bf16.gmra.mxu0 %v297
  %v505 = vpop.f32.mrf.mxu0
  %v506 = vadd.f32 %v88, %v505
  %v507 = vpop.f32.mrf.mxu0
  %v508 = vpop.f32.mrf.mxu0
  %v509 = vadd.f32 %v88, %v508
  %v510 = vpop.f32.mrf.mxu0
  %511 = vmatprep.mubr.bf16.mxu0 0
  %512 = vmatmul.mubr.bf16.gmra.mxu0 %v300
  %v513 = vpop.f32.mrf.mxu0
  %v514 = vadd.f32 %v88, %v513
  %v515 = vpop.f32.mrf.mxu0
  %v516 = vpop.f32.mrf.mxu0
  %v517 = vadd.f32 %v88, %v516
  %v518 = vpop.f32.mrf.mxu0
  %519 = vmatprep.mubr.bf16.mxu0 0
  %520 = vmatmul.mubr.bf16.gmra.mxu0 %v303
  %v521 = vpop.f32.mrf.mxu0
  %v522 = vadd.f32 %v88, %v521
  %v523 = vpop.f32.mrf.mxu0
  %v524 = vpop.f32.mrf.mxu0
  %v525 = vadd.f32 %v88, %v524
  %v526 = vpop.f32.mrf.mxu0
  %527 = vmatprep.mubr.bf16.mxu0 0
  %528 = vmatmul.mubr.bf16.gmra.mxu0 %v306
  %v529 = vpop.f32.mrf.mxu0
  %v530 = vadd.f32 %v88, %v529
  %v531 = vpop.f32.mrf.mxu0
  %v532 = vpop.f32.mrf.mxu0
  %v533 = vadd.f32 %v88, %v532
  %v534 = vpop.f32.mrf.mxu0
  %535 = vmatprep.mubr.bf16.mxu0 0
  %536 = vmatmul.mubr.bf16.gmra.mxu0 %v309
  %v537 = vpop.f32.mrf.mxu0
  %v538 = vadd.f32 %v88, %v537
  %v539 = vpop.f32.mrf.mxu0
  %v540 = vpop.f32.mrf.mxu0
  %v541 = vadd.f32 %v88, %v540
  %v542 = vpop.f32.mrf.mxu0
  %543 = vmatprep.mubr.bf16.mxu0 0
  %544 = vmatmul.mubr.bf16.gmra.mxu0 %v312
  %v545 = vpop.f32.mrf.mxu0
  %v546 = vadd.f32 %v88, %v545
  %v547 = vpop.f32.mrf.mxu0
  %v548 = vpop.f32.mrf.mxu0
  %v549 = vadd.f32 %v88, %v548
  %v550 = vpop.f32.mrf.mxu0
  %551 = vmatprep.mubr.bf16.mxu0 0
  %552 = vmatmul.mubr.bf16.gmra.mxu0 %v315
  %v553 = vpop.f32.mrf.mxu0
  %v554 = vadd.f32 %v88, %v553
  %v555 = vpop.f32.mrf.mxu0
  %v556 = vpop.f32.mrf.mxu0
  %v557 = vadd.f32 %v88, %v556
  %v558 = vpop.f32.mrf.mxu0
  %559 = vmatprep.mubr.bf16.mxu0 0
  %560 = vmatmul.mubr.bf16.gmra.mxu0 %v318
  %v561 = vpop.f32.mrf.mxu0
  %v562 = vadd.f32 %v88, %v561
  %v563 = vpop.f32.mrf.mxu0
  %v564 = vpop.f32.mrf.mxu0
  %v565 = vadd.f32 %v88, %v564
  %v566 = vpop.f32.mrf.mxu0
  %567 = vmatprep.mubr.bf16.mxu0 0
  %568 = vmatmul.mubr.bf16.gmra.mxu0 %v321
  %v569 = vpop.f32.mrf.mxu0
  %v570 = vadd.f32 %v88, %v569
  %v571 = vpop.f32.mrf.mxu0
  %v572 = vpop.f32.mrf.mxu0
  %v573 = vadd.f32 %v88, %v572
  %v574 = vpop.f32.mrf.mxu0
  %575 = vmatprep.mubr.bf16.mxu0 0
  %576 = vmatmul.mubr.bf16.gmra.mxu0 %v324
  %v577 = vpop.f32.mrf.mxu0
  %v578 = vadd.f32 %v88, %v577
  %v579 = vpop.f32.mrf.mxu0
  %v580 = vpop.f32.mrf.mxu0
  %v581 = vadd.f32 %v88, %v580
  %v582 = vpop.f32.mrf.mxu0
  %583 = vmatprep.mubr.bf16.mxu0 0
  %584 = vmatmul.mubr.bf16.gmra.mxu0 %v327
  %v585 = vpop.f32.mrf.mxu0
  %v586 = vadd.f32 %v88, %v585
  %v587 = vpop.f32.mrf.mxu0
  %v588 = vpop.f32.mrf.mxu0
  %v589 = vadd.f32 %v88, %v588
  %v590 = vpop.f32.mrf.mxu0
  %591 = vmatprep.mubr.bf16.mxu0 0
  %592 = vmatmul.mubr.bf16.gmra.mxu0 %v330
  %v593 = vpop.f32.mrf.mxu0
  %v594 = vadd.f32 %v88, %v593
  %v595 = vpop.f32.mrf.mxu0
  %v596 = vpop.f32.mrf.mxu0
  %v597 = vadd.f32 %v88, %v596
  %v598 = vpop.f32.mrf.mxu0
  %599 = vmatprep.mubr.bf16.mxu0 0
  %600 = vmatmul.mubr.bf16.gmra.mxu0 %v333
  %v601 = vpop.f32.mrf.mxu0
  %v602 = vadd.f32 %v88, %v601
  %v603 = vpop.f32.mrf.mxu0
  %v604 = vpop.f32.mrf.mxu0
  %v605 = vadd.f32 %v88, %v604
  %v606 = vpop.f32.mrf.mxu0
  %607 = vmatprep.mubr.bf16.mxu0 0
  %608 = vmatmul.mubr.bf16.gmra.mxu0 %v336
  %v609 = vpop.f32.mrf.mxu0
  %v610 = vadd.f32 %v88, %v609
  %v611 = vpop.f32.mrf.mxu0
  %v612 = vpop.f32.mrf.mxu0
  %v613 = vadd.f32 %v88, %v612
  %v614 = vpop.f32.mrf.mxu0
  %615 = vmatprep.mubr.bf16.mxu0 0
  %616 = vmatmul.mubr.bf16.gmra.mxu0 %v339
  %v617 = vpop.f32.mrf.mxu0
  %v618 = vadd.f32 %v88, %v617
  %v619 = vpop.f32.mrf.mxu0
  %v620 = vpop.f32.mrf.mxu0
  %v621 = vadd.f32 %v88, %v620
  %v622 = vpop.f32.mrf.mxu0
  %623 = vmatprep.mubr.bf16.mxu0 0
  %624 = vmatmul.mubr.bf16.gmra.mxu0 %v342
  %v625 = vpop.f32.mrf.mxu0
  %v626 = vadd.f32 %v88, %v625
  %v627 = vpop.f32.mrf.mxu0
  %v628 = vpop.f32.mrf.mxu0
  %v629 = vadd.f32 %v88, %v628
  %v630 = vpop.f32.mrf.mxu0
  %631 = vmatprep.mubr.bf16.mxu0 0
  %632 = vmatmul.mubr.bf16.gmra.mxu0 %v345
  %v633 = vpop.f32.mrf.mxu0
  %v634 = vadd.f32 %v88, %v633
  %v635 = vpop.f32.mrf.mxu0
  %v636 = vpop.f32.mrf.mxu0
  %v637 = vadd.f32 %v88, %v636
  %v638 = vpop.f32.mrf.mxu0
  %639 = vdwg.mxu0
  %v640 = vmax.f32 %v386, 0.0
  %v641 = vmax.f32 %v389, 0.0
  %v642 = vmax.f32 %v394, 0.0
  %v643 = vmax.f32 %v397, 0.0
  %v644 = vmax.f32 %v402, 0.0
  %v645 = vmax.f32 %v405, 0.0
  %v646 = vmax.f32 %v410, 0.0
  %v647 = vmax.f32 %v413, 0.0
  %v648 = vmax.f32 %v418, 0.0
  %v649 = vmax.f32 %v421, 0.0
  %v650 = vmax.f32 %v426, 0.0
  %v651 = vmax.f32 %v429, 0.0
  %v652 = vmax.f32 %v434, 0.0
  %v653 = vmax.f32 %v437, 0.0
  %v654 = vmax.f32 %v442, 0.0
  %v655 = vmax.f32 %v445, 0.0
  %v656 = vmax.f32 %v450, 0.0
  %v657 = vmax.f32 %v453, 0.0
  %v658 = vmax.f32 %v458, 0.0
  %v659 = vmax.f32 %v461, 0.0
  %v660 = vmax.f32 %v466, 0.0
  %v661 = vmax.f32 %v469, 0.0
  %v662 = vmax.f32 %v474, 0.0
  %v663 = vmax.f32 %v477, 0.0
  %v664 = vmax.f32 %v482, 0.0
  %v665 = vmax.f32 %v485, 0.0
  %v666 = vmax.f32 %v490, 0.0
  %v667 = vmax.f32 %v493, 0.0
  %v668 = vmax.f32 %v498, 0.0
  %v669 = vmax.f32 %v501, 0.0
  %v670 = vmax.f32 %v506, 0.0
  %v671 = vmax.f32 %v509, 0.0
  %v672 = vmax.f32 %v514, 0.0
  %v673 = vmax.f32 %v517, 0.0
  %v674 = vmax.f32 %v522, 0.0
  %v675 = vmax.f32 %v525, 0.0
  %v676 = vmax.f32 %v530, 0.0
  %v677 = vmax.f32 %v533, 0.0
  %v678 = vmax.f32 %v538, 0.0
  %v679 = vmax.f32 %v541, 0.0
  %v680 = vmax.f32 %v546, 0.0
  %v681 = vmax.f32 %v549, 0.0
  %v682 = vmax.f32 %v554, 0.0
  %v683 = vmax.f32 %v557, 0.0
  %v684 = vmax.f32 %v562, 0.0
  %v685 = vmax.f32 %v565, 0.0
  %v686 = vmax.f32 %v570, 0.0
  %v687 = vmax.f32 %v573, 0.0
  %v688 = vmax.f32 %v578, 0.0
  %v689 = vmax.f32 %v581, 0.0
  %v690 = vmax.f32 %v586, 0.0
  %v691 = vmax.f32 %v589, 0.0
  %v692 = vmax.f32 %v594, 0.0
  %v693 = vmax.f32 %v597, 0.0
  %v694 = vmax.f32 %v602, 0.0
  %v695 = vmax.f32 %v605, 0.0
  %v696 = vmax.f32 %v610, 0.0
  %v697 = vmax.f32 %v613, 0.0
  %v698 = vmax.f32 %v618, 0.0
  %v699 = vmax.f32 %v621, 0.0
  %v700 = vmax.f32 %v626, 0.0
  %v701 = vmax.f32 %v629, 0.0
  %v702 = vmax.f32 %v634, 0.0
  %v703 = vmax.f32 %v637, 0.0
  %v704 = vpack.c.bf16 %v641, %v640
  %v705 = vpack.c.bf16 %v643, %v642
  %v706 = vpack.c.bf16 %v645, %v644
  %v707 = vpack.c.bf16 %v647, %v646
  %v708 = vpack.c.bf16 %v649, %v648
  %v709 = vpack.c.bf16 %v651, %v650
  %v710 = vpack.c.bf16 %v653, %v652
  %v711 = vpack.c.bf16 %v655, %v654
  %v712 = vpack.c.bf16 %v657, %v656
  %v713 = vpack.c.bf16 %v659, %v658
  %v714 = vpack.c.bf16 %v661, %v660
  %v715 = vpack.c.bf16 %v663, %v662
  %v716 = vpack.c.bf16 %v665, %v664
  %v717 = vpack.c.bf16 %v667, %v666
  %v718 = vpack.c.bf16 %v669, %v668
  %v719 = vpack.c.bf16 %v671, %v670
  %v720 = vpack.c.bf16 %v673, %v672
  %v721 = vpack.c.bf16 %v675, %v674
  %v722 = vpack.c.bf16 %v677, %v676
  %v723 = vpack.c.bf16 %v679, %v678
  %v724 = vpack.c.bf16 %v681, %v680
  %v725 = vpack.c.bf16 %v683, %v682
  %v726 = vpack.c.bf16 %v685, %v684
  %v727 = vpack.c.bf16 %v687, %v686
  %v728 = vpack.c.bf16 %v689, %v688
  %v729 = vpack.c.bf16 %v691, %v690
  %v730 = vpack.c.bf16 %v693, %v692
  %v731 = vpack.c.bf16 %v695, %v694
  %v732 = vpack.c.bf16 %v697, %v696
  %v733 = vpack.c.bf16 %v699, %v698
  %v734 = vpack.c.bf16 %v701, %v700
  %v735 = vpack.c.bf16 %v703, %v702
  %v736 = vld [vmem:[%s3] sm:$0xf]
  %v737 = vld [vmem:[%s3 + $0x4] sm:$0xf]
  %v738 = vld [vmem:[%s3 + $0x8] sm:$0xf]
  %v739 = vld [vmem:[%s3 + $0xc] sm:$0xf]
  %v744 = vunpack.c.l.b16 %v736
  %v745 = vunpack.c.l.b16 %v737
  %v746 = vunpack.c.l.b16 %v738
  %v747 = vunpack.c.l.b16 %v739
  %v748 = vpack.c.b16 %v745, %v744
  %v749 = vpack.c.b16 %v747, %v746
  %vm752 = vcmask 261120
  %v754 = vsel %vm752, %v704, 0
  %v757 = vsel %vm752, %v705, 0
  %v760 = vsel %vm752, %v706, 0
  %v763 = vsel %vm752, %v707, 0
  %v766 = vsel %vm752, %v708, 0
  %v769 = vsel %vm752, %v709, 0
  %v772 = vsel %vm752, %v710, 0
  %v775 = vsel %vm752, %v711, 0
  %v778 = vsel %vm752, %v712, 0
  %v781 = vsel %vm752, %v713, 0
  %v784 = vsel %vm752, %v714, 0
  %v787 = vsel %vm752, %v715, 0
  %v790 = vsel %vm752, %v716, 0
  %v793 = vsel %vm752, %v717, 0
  %v796 = vsel %vm752, %v718, 0
  %v799 = vsel %vm752, %v719, 0
  %v802 = vsel %vm752, %v720, 0
  %v805 = vsel %vm752, %v721, 0
  %v808 = vsel %vm752, %v722, 0
  %v811 = vsel %vm752, %v723, 0
  %v814 = vsel %vm752, %v724, 0
  %v817 = vsel %vm752, %v725, 0
  %v820 = vsel %vm752, %v726, 0
  %v823 = vsel %vm752, %v727, 0
  %v826 = vsel %vm752, %v728, 0
  %v829 = vsel %vm752, %v729, 0
  %v832 = vsel %vm752, %v730, 0
  %v835 = vsel %vm752, %v731, 0
  %v838 = vsel %vm752, %v732, 0
  %v841 = vsel %vm752, %v733, 0
  %v844 = vsel %vm752, %v734, 0
  %v847 = vsel %vm752, %v735, 0
  %849 = vmatprep.subr.bf16.mxu0 0
  %850 = vmatpush1.bf16.msra.mxu0 0
  %851 = vmatprep.subr.bf16.mxu0 0
  %852 = vmatpush1.bf16.msra.mxu0 0
  %853 = vmatprep.subr.bf16.mxu0 0
  %854 = vmatpush1.bf16.msra.mxu0 0
  %855 = vmatprep.subr.bf16.mxu0 0
  %856 = vmatpush1.bf16.msra.mxu0 0
  %857 = vmatprep.subr.bf16.mxu0 0
  %858 = vmatpush1.bf16.msra.mxu0 0
  %859 = vmatprep.subr.bf16.mxu0 0
  %860 = vmatpush1.bf16.msra.mxu0 0
  %861 = vmatprep.subr.bf16.mxu0 0
  %862 = vmatpush1.bf16.msra.mxu0 %v749
  %863 = vmatprep.subr.bf16.mxu0 0
  %864 = vmatpush1.bf16.msra.mxu0 %v748
  %865 = vmatprep.subr.bf16.mxu0 0
  %866 = vmatpush2.bf16.msra.mxu0 0
  %867 = vmatprep.subr.bf16.mxu0 0
  %868 = vmatpush2.bf16.msra.mxu0 0
  %869 = vmatprep.subr.bf16.mxu0 0
  %870 = vmatpush2.bf16.msra.mxu0 0
  %871 = vmatprep.subr.bf16.mxu0 0
  %872 = vmatpush2.bf16.msra.mxu0 0
  %873 = vmatprep.subr.bf16.mxu0 0
  %874 = vmatpush2.bf16.msra.mxu0 0
  %875 = vmatprep.subr.bf16.mxu0 0
  %876 = vmatpush2.bf16.msra.mxu0 0
  %877 = vmatprep.subr.bf16.mxu0 0
  %878 = vmatpush2.bf16.msra.mxu0 0
  %879 = vmatprep.subr.bf16.mxu0 0
  %880 = vmatpush2.bf16.msra.mxu0 0
  %881 = vmatprep.mubr.bf16.mxu0 0
  %882 = vmatmul.mubr.bf16.gmra.mxu0 %v754
  %v883 = vpop.f32.mrf.mxu0
  %v884 = vadd.f32 0.0, %v883
  %v885 = vpop.f32.mrf.mxu0
  %v886 = vpop.f32.mrf.mxu0
  %v887 = vadd.f32 0.0, %v886
  %v888 = vpop.f32.mrf.mxu0
  %889 = vmatprep.mubr.bf16.mxu0 0
  %890 = vmatmul.mubr.bf16.gmra.mxu0 %v757
  %v891 = vpop.f32.mrf.mxu0
  %v892 = vadd.f32 0.0, %v891
  %v893 = vpop.f32.mrf.mxu0
  %v894 = vpop.f32.mrf.mxu0
  %v895 = vadd.f32 0.0, %v894
  %v896 = vpop.f32.mrf.mxu0
  %897 = vmatprep.mubr.bf16.mxu0 0
  %898 = vmatmul.mubr.bf16.gmra.mxu0 %v760
  %v899 = vpop.f32.mrf.mxu0
  %v900 = vadd.f32 0.0, %v899
  %v901 = vpop.f32.mrf.mxu0
  %v902 = vpop.f32.mrf.mxu0
  %v903 = vadd.f32 0.0, %v902
  %v904 = vpop.f32.mrf.mxu0
  %905 = vmatprep.mubr.bf16.mxu0 0
  %906 = vmatmul.mubr.bf16.gmra.mxu0 %v763
  %v907 = vpop.f32.mrf.mxu0
  %v908 = vadd.f32 0.0, %v907
  %v909 = vpop.f32.mrf.mxu0
  %v910 = vpop.f32.mrf.mxu0
  %v911 = vadd.f32 0.0, %v910
  %v912 = vpop.f32.mrf.mxu0
  %913 = vmatprep.mubr.bf16.mxu0 0
  %914 = vmatmul.mubr.bf16.gmra.mxu0 %v766
  %v915 = vpop.f32.mrf.mxu0
  %v916 = vadd.f32 0.0, %v915
  %v917 = vpop.f32.mrf.mxu0
  %v918 = vpop.f32.mrf.mxu0
  %v919 = vadd.f32 0.0, %v918
  %v920 = vpop.f32.mrf.mxu0
  %921 = vmatprep.mubr.bf16.mxu0 0
  %922 = vmatmul.mubr.bf16.gmra.mxu0 %v769
  %v923 = vpop.f32.mrf.mxu0
  %v924 = vadd.f32 0.0, %v923
  %v925 = vpop.f32.mrf.mxu0
  %v926 = vpop.f32.mrf.mxu0
  %v927 = vadd.f32 0.0, %v926
  %v928 = vpop.f32.mrf.mxu0
  %929 = vmatprep.mubr.bf16.mxu0 0
  %930 = vmatmul.mubr.bf16.gmra.mxu0 %v772
  %v931 = vpop.f32.mrf.mxu0
  %v932 = vadd.f32 0.0, %v931
  %v933 = vpop.f32.mrf.mxu0
  %v934 = vpop.f32.mrf.mxu0
  %v935 = vadd.f32 0.0, %v934
  %v936 = vpop.f32.mrf.mxu0
  %937 = vmatprep.mubr.bf16.mxu0 0
  %938 = vmatmul.mubr.bf16.gmra.mxu0 %v775
  %v939 = vpop.f32.mrf.mxu0
  %v940 = vadd.f32 0.0, %v939
  %v941 = vpop.f32.mrf.mxu0
  %v942 = vpop.f32.mrf.mxu0
  %v943 = vadd.f32 0.0, %v942
  %v944 = vpop.f32.mrf.mxu0
  %945 = vmatprep.mubr.bf16.mxu0 0
  %946 = vmatmul.mubr.bf16.gmra.mxu0 %v778
  %v947 = vpop.f32.mrf.mxu0
  %v948 = vadd.f32 0.0, %v947
  %v949 = vpop.f32.mrf.mxu0
  %v950 = vpop.f32.mrf.mxu0
  %v951 = vadd.f32 0.0, %v950
  %v952 = vpop.f32.mrf.mxu0
  %953 = vmatprep.mubr.bf16.mxu0 0
  %954 = vmatmul.mubr.bf16.gmra.mxu0 %v781
  %v955 = vpop.f32.mrf.mxu0
  %v956 = vadd.f32 0.0, %v955
  %v957 = vpop.f32.mrf.mxu0
  %v958 = vpop.f32.mrf.mxu0
  %v959 = vadd.f32 0.0, %v958
  %v960 = vpop.f32.mrf.mxu0
  %961 = vmatprep.mubr.bf16.mxu0 0
  %962 = vmatmul.mubr.bf16.gmra.mxu0 %v784
  %v963 = vpop.f32.mrf.mxu0
  %v964 = vadd.f32 0.0, %v963
  %v965 = vpop.f32.mrf.mxu0
  %v966 = vpop.f32.mrf.mxu0
  %v967 = vadd.f32 0.0, %v966
  %v968 = vpop.f32.mrf.mxu0
  %969 = vmatprep.mubr.bf16.mxu0 0
  %970 = vmatmul.mubr.bf16.gmra.mxu0 %v787
  %v971 = vpop.f32.mrf.mxu0
  %v972 = vadd.f32 0.0, %v971
  %v973 = vpop.f32.mrf.mxu0
  %v974 = vpop.f32.mrf.mxu0
  %v975 = vadd.f32 0.0, %v974
  %v976 = vpop.f32.mrf.mxu0
  %977 = vmatprep.mubr.bf16.mxu0 0
  %978 = vmatmul.mubr.bf16.gmra.mxu0 %v790
  %v979 = vpop.f32.mrf.mxu0
  %v980 = vadd.f32 0.0, %v979
  %v981 = vpop.f32.mrf.mxu0
  %v982 = vpop.f32.mrf.mxu0
  %v983 = vadd.f32 0.0, %v982
  %v984 = vpop.f32.mrf.mxu0
  %985 = vmatprep.mubr.bf16.mxu0 0
  %986 = vmatmul.mubr.bf16.gmra.mxu0 %v793
  %v987 = vpop.f32.mrf.mxu0
  %v988 = vadd.f32 0.0, %v987
  %v989 = vpop.f32.mrf.mxu0
  %v990 = vpop.f32.mrf.mxu0
  %v991 = vadd.f32 0.0, %v990
  %v992 = vpop.f32.mrf.mxu0
  %993 = vmatprep.mubr.bf16.mxu0 0
  %994 = vmatmul.mubr.bf16.gmra.mxu0 %v796
  %v995 = vpop.f32.mrf.mxu0
  %v996 = vadd.f32 0.0, %v995
  %v997 = vpop.f32.mrf.mxu0
  %v998 = vpop.f32.mrf.mxu0
  %v999 = vadd.f32 0.0, %v998
  %v1000 = vpop.f32.mrf.mxu0
  %1001 = vmatprep.mubr.bf16.mxu0 0
  %1002 = vmatmul.mubr.bf16.gmra.mxu0 %v799
  %v1003 = vpop.f32.mrf.mxu0
  %v1004 = vadd.f32 0.0, %v1003
  %v1005 = vpop.f32.mrf.mxu0
  %v1006 = vpop.f32.mrf.mxu0
  %v1007 = vadd.f32 0.0, %v1006
  %v1008 = vpop.f32.mrf.mxu0
  %1009 = vmatprep.mubr.bf16.mxu0 0
  %1010 = vmatmul.mubr.bf16.gmra.mxu0 %v802
  %v1011 = vpop.f32.mrf.mxu0
  %v1012 = vadd.f32 0.0, %v1011
  %v1013 = vpop.f32.mrf.mxu0
  %v1014 = vpop.f32.mrf.mxu0
  %v1015 = vadd.f32 0.0, %v1014
  %v1016 = vpop.f32.mrf.mxu0
  %1017 = vmatprep.mubr.bf16.mxu0 0
  %1018 = vmatmul.mubr.bf16.gmra.mxu0 %v805
  %v1019 = vpop.f32.mrf.mxu0
  %v1020 = vadd.f32 0.0, %v1019
  %v1021 = vpop.f32.mrf.mxu0
  %v1022 = vpop.f32.mrf.mxu0
  %v1023 = vadd.f32 0.0, %v1022
  %v1024 = vpop.f32.mrf.mxu0
  %1025 = vmatprep.mubr.bf16.mxu0 0
  %1026 = vmatmul.mubr.bf16.gmra.mxu0 %v808
  %v1027 = vpop.f32.mrf.mxu0
  %v1028 = vadd.f32 0.0, %v1027
  %v1029 = vpop.f32.mrf.mxu0
  %v1030 = vpop.f32.mrf.mxu0
  %v1031 = vadd.f32 0.0, %v1030
  %v1032 = vpop.f32.mrf.mxu0
  %1033 = vmatprep.mubr.bf16.mxu0 0
  %1034 = vmatmul.mubr.bf16.gmra.mxu0 %v811
  %v1035 = vpop.f32.mrf.mxu0
  %v1036 = vadd.f32 0.0, %v1035
  %v1037 = vpop.f32.mrf.mxu0
  %v1038 = vpop.f32.mrf.mxu0
  %v1039 = vadd.f32 0.0, %v1038
  %v1040 = vpop.f32.mrf.mxu0
  %1041 = vmatprep.mubr.bf16.mxu0 0
  %1042 = vmatmul.mubr.bf16.gmra.mxu0 %v814
  %v1043 = vpop.f32.mrf.mxu0
  %v1044 = vadd.f32 0.0, %v1043
  %v1045 = vpop.f32.mrf.mxu0
  %v1046 = vpop.f32.mrf.mxu0
  %v1047 = vadd.f32 0.0, %v1046
  %v1048 = vpop.f32.mrf.mxu0
  %1049 = vmatprep.mubr.bf16.mxu0 0
  %1050 = vmatmul.mubr.bf16.gmra.mxu0 %v817
  %v1051 = vpop.f32.mrf.mxu0
  %v1052 = vadd.f32 0.0, %v1051
  %v1053 = vpop.f32.mrf.mxu0
  %v1054 = vpop.f32.mrf.mxu0
  %v1055 = vadd.f32 0.0, %v1054
  %v1056 = vpop.f32.mrf.mxu0
  %1057 = vmatprep.mubr.bf16.mxu0 0
  %1058 = vmatmul.mubr.bf16.gmra.mxu0 %v820
  %v1059 = vpop.f32.mrf.mxu0
  %v1060 = vadd.f32 0.0, %v1059
  %v1061 = vpop.f32.mrf.mxu0
  %v1062 = vpop.f32.mrf.mxu0
  %v1063 = vadd.f32 0.0, %v1062
  %v1064 = vpop.f32.mrf.mxu0
  %1065 = vmatprep.mubr.bf16.mxu0 0
  %1066 = vmatmul.mubr.bf16.gmra.mxu0 %v823
  %v1067 = vpop.f32.mrf.mxu0
  %v1068 = vadd.f32 0.0, %v1067
  %v1069 = vpop.f32.mrf.mxu0
  %v1070 = vpop.f32.mrf.mxu0
  %v1071 = vadd.f32 0.0, %v1070
  %v1072 = vpop.f32.mrf.mxu0
  %1073 = vmatprep.mubr.bf16.mxu0 0
  %1074 = vmatmul.mubr.bf16.gmra.mxu0 %v826
  %v1075 = vpop.f32.mrf.mxu0
  %v1076 = vadd.f32 0.0, %v1075
  %v1077 = vpop.f32.mrf.mxu0
  %v1078 = vpop.f32.mrf.mxu0
  %v1079 = vadd.f32 0.0, %v1078
  %v1080 = vpop.f32.mrf.mxu0
  %1081 = vmatprep.mubr.bf16.mxu0 0
  %1082 = vmatmul.mubr.bf16.gmra.mxu0 %v829
  %v1083 = vpop.f32.mrf.mxu0
  %v1084 = vadd.f32 0.0, %v1083
  %v1085 = vpop.f32.mrf.mxu0
  %v1086 = vpop.f32.mrf.mxu0
  %v1087 = vadd.f32 0.0, %v1086
  %v1088 = vpop.f32.mrf.mxu0
  %1089 = vmatprep.mubr.bf16.mxu0 0
  %1090 = vmatmul.mubr.bf16.gmra.mxu0 %v832
  %v1091 = vpop.f32.mrf.mxu0
  %v1092 = vadd.f32 0.0, %v1091
  %v1093 = vpop.f32.mrf.mxu0
  %v1094 = vpop.f32.mrf.mxu0
  %v1095 = vadd.f32 0.0, %v1094
  %v1096 = vpop.f32.mrf.mxu0
  %1097 = vmatprep.mubr.bf16.mxu0 0
  %1098 = vmatmul.mubr.bf16.gmra.mxu0 %v835
  %v1099 = vpop.f32.mrf.mxu0
  %v1100 = vadd.f32 0.0, %v1099
  %v1101 = vpop.f32.mrf.mxu0
  %v1102 = vpop.f32.mrf.mxu0
  %v1103 = vadd.f32 0.0, %v1102
  %v1104 = vpop.f32.mrf.mxu0
  %1105 = vmatprep.mubr.bf16.mxu0 0
  %1106 = vmatmul.mubr.bf16.gmra.mxu0 %v838
  %v1107 = vpop.f32.mrf.mxu0
  %v1108 = vadd.f32 0.0, %v1107
  %v1109 = vpop.f32.mrf.mxu0
  %v1110 = vpop.f32.mrf.mxu0
  %v1111 = vadd.f32 0.0, %v1110
  %v1112 = vpop.f32.mrf.mxu0
  %1113 = vmatprep.mubr.bf16.mxu0 0
  %1114 = vmatmul.mubr.bf16.gmra.mxu0 %v841
  %v1115 = vpop.f32.mrf.mxu0
  %v1116 = vadd.f32 0.0, %v1115
  %v1117 = vpop.f32.mrf.mxu0
  %v1118 = vpop.f32.mrf.mxu0
  %v1119 = vadd.f32 0.0, %v1118
  %v1120 = vpop.f32.mrf.mxu0
  %1121 = vmatprep.mubr.bf16.mxu0 0
  %1122 = vmatmul.mubr.bf16.gmra.mxu0 %v844
  %v1123 = vpop.f32.mrf.mxu0
  %v1124 = vadd.f32 0.0, %v1123
  %v1125 = vpop.f32.mrf.mxu0
  %v1126 = vpop.f32.mrf.mxu0
  %v1127 = vadd.f32 0.0, %v1126
  %v1128 = vpop.f32.mrf.mxu0
  %1129 = vmatprep.mubr.bf16.mxu0 0
  %1130 = vmatmul.mubr.bf16.gmra.mxu0 %v847
  %v1131 = vpop.f32.mrf.mxu0
  %v1132 = vadd.f32 0.0, %v1131
  %v1133 = vpop.f32.mrf.mxu0
  %v1134 = vpop.f32.mrf.mxu0
  %v1135 = vadd.f32 0.0, %v1134
  %v1136 = vpop.f32.mrf.mxu0
  %1137 = vdwg.mxu0
  %v1138 = vpack.c.bf16 %v887, %v884
  %v1139 = vpack.c.bf16 %v895, %v892
  %v1140 = vpack.c.bf16 %v903, %v900
  %v1141 = vpack.c.bf16 %v911, %v908
  %v1142 = vpack.c.bf16 %v919, %v916
  %v1143 = vpack.c.bf16 %v927, %v924
  %v1144 = vpack.c.bf16 %v935, %v932
  %v1145 = vpack.c.bf16 %v943, %v940
  %v1146 = vpack.c.bf16 %v951, %v948
  %v1147 = vpack.c.bf16 %v959, %v956
  %v1148 = vpack.c.bf16 %v967, %v964
  %v1149 = vpack.c.bf16 %v975, %v972
  %v1150 = vpack.c.bf16 %v983, %v980
  %v1151 = vpack.c.bf16 %v991, %v988
  %v1152 = vpack.c.bf16 %v999, %v996
  %v1153 = vpack.c.bf16 %v1007, %v1004
  %v1154 = vpack.c.bf16 %v1015, %v1012
  %v1155 = vpack.c.bf16 %v1023, %v1020
  %v1156 = vpack.c.bf16 %v1031, %v1028
  %v1157 = vpack.c.bf16 %v1039, %v1036
  %v1158 = vpack.c.bf16 %v1047, %v1044
  %v1159 = vpack.c.bf16 %v1055, %v1052
  %v1160 = vpack.c.bf16 %v1063, %v1060
  %v1161 = vpack.c.bf16 %v1071, %v1068
  %v1162 = vpack.c.bf16 %v1079, %v1076
  %v1163 = vpack.c.bf16 %v1087, %v1084
  %v1164 = vpack.c.bf16 %v1095, %v1092
  %v1165 = vpack.c.bf16 %v1103, %v1100
  %v1166 = vpack.c.bf16 %v1111, %v1108
  %v1167 = vpack.c.bf16 %v1119, %v1116
  %v1168 = vpack.c.bf16 %v1127, %v1124
  %v1169 = vpack.c.bf16 %v1135, %v1132
  %v1202 = vunpack.c.l.b16 %v1138
  %v1203 = vunpack.c.h.b16 %v1138
  %v1204 = vunpack.c.l.b16 %v1139
  %v1205 = vunpack.c.h.b16 %v1139
  %v1206 = vunpack.c.l.b16 %v1140
  %v1207 = vunpack.c.h.b16 %v1140
  %v1208 = vunpack.c.l.b16 %v1141
  %v1209 = vunpack.c.h.b16 %v1141
  %v1210 = vunpack.c.l.b16 %v1142
  %v1211 = vunpack.c.h.b16 %v1142
  %v1212 = vunpack.c.l.b16 %v1143
  %v1213 = vunpack.c.h.b16 %v1143
  %v1214 = vunpack.c.l.b16 %v1144
  %v1215 = vunpack.c.h.b16 %v1144
  %v1216 = vunpack.c.l.b16 %v1145
  %v1217 = vunpack.c.h.b16 %v1145
  %v1218 = vunpack.c.l.b16 %v1146
  %v1219 = vunpack.c.h.b16 %v1146
  %v1220 = vunpack.c.l.b16 %v1147
  %v1221 = vunpack.c.h.b16 %v1147
  %v1222 = vunpack.c.l.b16 %v1148
  %v1223 = vunpack.c.h.b16 %v1148
  %v1224 = vunpack.c.l.b16 %v1149
  %v1225 = vunpack.c.h.b16 %v1149
  %v1226 = vunpack.c.l.b16 %v1150
  %v1227 = vunpack.c.h.b16 %v1150
  %v1228 = vunpack.c.l.b16 %v1151
  %v1229 = vunpack.c.h.b16 %v1151
  %v1230 = vunpack.c.l.b16 %v1152
  %v1231 = vunpack.c.h.b16 %v1152
  %v1232 = vunpack.c.l.b16 %v1153
  %v1233 = vunpack.c.h.b16 %v1153
  %v1234 = vunpack.c.l.b16 %v1154
  %v1235 = vunpack.c.h.b16 %v1154
  %v1236 = vunpack.c.l.b16 %v1155
  %v1237 = vunpack.c.h.b16 %v1155
  %v1238 = vunpack.c.l.b16 %v1156
  %v1239 = vunpack.c.h.b16 %v1156
  %v1240 = vunpack.c.l.b16 %v1157
  %v1241 = vunpack.c.h.b16 %v1157
  %v1242 = vunpack.c.l.b16 %v1158
  %v1243 = vunpack.c.h.b16 %v1158
  %v1244 = vunpack.c.l.b16 %v1159
  %v1245 = vunpack.c.h.b16 %v1159
  %v1246 = vunpack.c.l.b16 %v1160
  %v1247 = vunpack.c.h.b16 %v1160
  %v1248 = vunpack.c.l.b16 %v1161
  %v1249 = vunpack.c.h.b16 %v1161
  %v1250 = vunpack.c.l.b16 %v1162
  %v1251 = vunpack.c.h.b16 %v1162
  %v1252 = vunpack.c.l.b16 %v1163
  %v1253 = vunpack.c.h.b16 %v1163
  %v1254 = vunpack.c.l.b16 %v1164
  %v1255 = vunpack.c.h.b16 %v1164
  %v1256 = vunpack.c.l.b16 %v1165
  %v1257 = vunpack.c.h.b16 %v1165
  %v1258 = vunpack.c.l.b16 %v1166
  %v1259 = vunpack.c.h.b16 %v1166
  %v1260 = vunpack.c.l.b16 %v1167
  %v1261 = vunpack.c.h.b16 %v1167
  %v1262 = vunpack.c.l.b16 %v1168
  %v1263 = vunpack.c.h.b16 %v1168
  %v1264 = vunpack.c.l.b16 %v1169
  %v1265 = vunpack.c.h.b16 %v1169
  %v1266 = vpack.c.b16 %v1202, %v1202
  %v1267 = vpack.c.b16 %v1203, %v1203
  %v1268 = vpack.c.b16 %v1204, %v1204
  %v1269 = vpack.c.b16 %v1205, %v1205
  %v1270 = vpack.c.b16 %v1206, %v1206
  %v1271 = vpack.c.b16 %v1207, %v1207
  %v1272 = vpack.c.b16 %v1208, %v1208
  %v1273 = vpack.c.b16 %v1209, %v1209
  %v1274 = vpack.c.b16 %v1210, %v1210
  %v1275 = vpack.c.b16 %v1211, %v1211
  %v1276 = vpack.c.b16 %v1212, %v1212
  %v1277 = vpack.c.b16 %v1213, %v1213
  %v1278 = vpack.c.b16 %v1214, %v1214
  %v1279 = vpack.c.b16 %v1215, %v1215
  %v1280 = vpack.c.b16 %v1216, %v1216
  %v1281 = vpack.c.b16 %v1217, %v1217
  %v1282 = vpack.c.b16 %v1218, %v1218
  %v1283 = vpack.c.b16 %v1219, %v1219
  %v1284 = vpack.c.b16 %v1220, %v1220
  %v1285 = vpack.c.b16 %v1221, %v1221
  %v1286 = vpack.c.b16 %v1222, %v1222
  %v1287 = vpack.c.b16 %v1223, %v1223
  %v1288 = vpack.c.b16 %v1224, %v1224
  %v1289 = vpack.c.b16 %v1225, %v1225
  %v1290 = vpack.c.b16 %v1226, %v1226
  %v1291 = vpack.c.b16 %v1227, %v1227
  %v1292 = vpack.c.b16 %v1228, %v1228
  %v1293 = vpack.c.b16 %v1229, %v1229
  %v1294 = vpack.c.b16 %v1230, %v1230
  %v1295 = vpack.c.b16 %v1231, %v1231
  %v1296 = vpack.c.b16 %v1232, %v1232
  %v1297 = vpack.c.b16 %v1233, %v1233
  %v1298 = vpack.c.b16 %v1234, %v1234
  %v1299 = vpack.c.b16 %v1235, %v1235
  %v1300 = vpack.c.b16 %v1236, %v1236
  %v1301 = vpack.c.b16 %v1237, %v1237
  %v1302 = vpack.c.b16 %v1238, %v1238
  %v1303 = vpack.c.b16 %v1239, %v1239
  %v1304 = vpack.c.b16 %v1240, %v1240
  %v1305 = vpack.c.b16 %v1241, %v1241
  %v1306 = vpack.c.b16 %v1242, %v1242
  %v1307 = vpack.c.b16 %v1243, %v1243
  %v1308 = vpack.c.b16 %v1244, %v1244
  %v1309 = vpack.c.b16 %v1245, %v1245
  %v1310 = vpack.c.b16 %v1246, %v1246
  %v1311 = vpack.c.b16 %v1247, %v1247
  %v1312 = vpack.c.b16 %v1248, %v1248
  %v1313 = vpack.c.b16 %v1249, %v1249
  %v1314 = vpack.c.b16 %v1250, %v1250
  %v1315 = vpack.c.b16 %v1251, %v1251
  %v1316 = vpack.c.b16 %v1252, %v1252
  %v1317 = vpack.c.b16 %v1253, %v1253
  %v1318 = vpack.c.b16 %v1254, %v1254
  %v1319 = vpack.c.b16 %v1255, %v1255
  %v1320 = vpack.c.b16 %v1256, %v1256
  %v1321 = vpack.c.b16 %v1257, %v1257
  %v1322 = vpack.c.b16 %v1258, %v1258
  %v1323 = vpack.c.b16 %v1259, %v1259
  %v1324 = vpack.c.b16 %v1260, %v1260
  %v1325 = vpack.c.b16 %v1261, %v1261
  %v1326 = vpack.c.b16 %v1262, %v1262
  %v1327 = vpack.c.b16 %v1263, %v1263
  %v1328 = vpack.c.b16 %v1264, %v1264
  %v1329 = vpack.c.b16 %v1265, %v1265
  %vm1394 = vcmask 257024
  %1395 = vst.msk [vmem:[%s4] sm:$0xf] %vm1394, %v1266
  %1396 = vst.msk [vmem:[%s4 + $0x4] sm:$0xf] %vm1394, %v1267
  %1397 = vst.msk [vmem:[%s4 + $0x8] sm:$0xf] %vm1394, %v1268
  %1398 = vst.msk [vmem:[%s4 + $0xc] sm:$0xf] %vm1394, %v1269
  %1399 = vst.msk [vmem:[%s4 + $0x10] sm:$0xf] %vm1394, %v1270
  %1400 = vst.msk [vmem:[%s4 + $0x14] sm:$0xf] %vm1394, %v1271
  %1401 = vst.msk [vmem:[%s4 + $0x18] sm:$0xf] %vm1394, %v1272
  %1402 = vst.msk [vmem:[%s4 + $0x1c] sm:$0xf] %vm1394, %v1273
  %1403 = vst.msk [vmem:[%s4 + $0x20] sm:$0xf] %vm1394, %v1274
  %1404 = vst.msk [vmem:[%s4 + $0x24] sm:$0xf] %vm1394, %v1275
  %1405 = vst.msk [vmem:[%s4 + $0x28] sm:$0xf] %vm1394, %v1276
  %1406 = vst.msk [vmem:[%s4 + $0x2c] sm:$0xf] %vm1394, %v1277
  %1407 = vst.msk [vmem:[%s4 + $0x30] sm:$0xf] %vm1394, %v1278
  %1408 = vst.msk [vmem:[%s4 + $0x34] sm:$0xf] %vm1394, %v1279
  %1409 = vst.msk [vmem:[%s4 + $0x38] sm:$0xf] %vm1394, %v1280
  %1410 = vst.msk [vmem:[%s4 + $0x3c] sm:$0xf] %vm1394, %v1281
  %1411 = vst.msk [vmem:[%s4 + $0x40] sm:$0xf] %vm1394, %v1282
  %1412 = vst.msk [vmem:[%s4 + $0x44] sm:$0xf] %vm1394, %v1283
  %1413 = vst.msk [vmem:[%s4 + $0x48] sm:$0xf] %vm1394, %v1284
  %1414 = vst.msk [vmem:[%s4 + $0x4c] sm:$0xf] %vm1394, %v1285
  %1415 = vst.msk [vmem:[%s4 + $0x50] sm:$0xf] %vm1394, %v1286
  %1416 = vst.msk [vmem:[%s4 + $0x54] sm:$0xf] %vm1394, %v1287
  %1417 = vst.msk [vmem:[%s4 + $0x58] sm:$0xf] %vm1394, %v1288
  %1418 = vst.msk [vmem:[%s4 + $0x5c] sm:$0xf] %vm1394, %v1289
  %1419 = vst.msk [vmem:[%s4 + $0x60] sm:$0xf] %vm1394, %v1290
  %1420 = vst.msk [vmem:[%s4 + $0x64] sm:$0xf] %vm1394, %v1291
  %1421 = vst.msk [vmem:[%s4 + $0x68] sm:$0xf] %vm1394, %v1292
  %1422 = vst.msk [vmem:[%s4 + $0x6c] sm:$0xf] %vm1394, %v1293
  %1423 = vst.msk [vmem:[%s4 + $0x70] sm:$0xf] %vm1394, %v1294
  %1424 = vst.msk [vmem:[%s4 + $0x74] sm:$0xf] %vm1394, %v1295
  %1425 = vst.msk [vmem:[%s4 + $0x78] sm:$0xf] %vm1394, %v1296
  %1426 = vst.msk [vmem:[%s4 + $0x7c] sm:$0xf] %vm1394, %v1297
  %1427 = vst.msk [vmem:[%s4 + $0x80] sm:$0xf] %vm1394, %v1298
  %1428 = vst.msk [vmem:[%s4 + $0x84] sm:$0xf] %vm1394, %v1299
  %1429 = vst.msk [vmem:[%s4 + $0x88] sm:$0xf] %vm1394, %v1300
  %1430 = vst.msk [vmem:[%s4 + $0x8c] sm:$0xf] %vm1394, %v1301
  %1431 = vst.msk [vmem:[%s4 + $0x90] sm:$0xf] %vm1394, %v1302
  %1432 = vst.msk [vmem:[%s4 + $0x94] sm:$0xf] %vm1394, %v1303
  %1433 = vst.msk [vmem:[%s4 + $0x98] sm:$0xf] %vm1394, %v1304
  %1434 = vst.msk [vmem:[%s4 + $0x9c] sm:$0xf] %vm1394, %v1305
  %1435 = vst.msk [vmem:[%s4 + $0xa0] sm:$0xf] %vm1394, %v1306
  %1436 = vst.msk [vmem:[%s4 + $0xa4] sm:$0xf] %vm1394, %v1307
  %1437 = vst.msk [vmem:[%s4 + $0xa8] sm:$0xf] %vm1394, %v1308
  %1438 = vst.msk [vmem:[%s4 + $0xac] sm:$0xf] %vm1394, %v1309
  %1439 = vst.msk [vmem:[%s4 + $0xb0] sm:$0xf] %vm1394, %v1310
  %1440 = vst.msk [vmem:[%s4 + $0xb4] sm:$0xf] %vm1394, %v1311
  %1441 = vst.msk [vmem:[%s4 + $0xb8] sm:$0xf] %vm1394, %v1312
  %1442 = vst.msk [vmem:[%s4 + $0xbc] sm:$0xf] %vm1394, %v1313
  %1443 = vst.msk [vmem:[%s4 + $0xc0] sm:$0xf] %vm1394, %v1314
  %1444 = vst.msk [vmem:[%s4 + $0xc4] sm:$0xf] %vm1394, %v1315
  %1445 = vst.msk [vmem:[%s4 + $0xc8] sm:$0xf] %vm1394, %v1316
  %1446 = vst.msk [vmem:[%s4 + $0xcc] sm:$0xf] %vm1394, %v1317
  %1447 = vst.msk [vmem:[%s4 + $0xd0] sm:$0xf] %vm1394, %v1318
  %1448 = vst.msk [vmem:[%s4 + $0xd4] sm:$0xf] %vm1394, %v1319
  %1449 = vst.msk [vmem:[%s4 + $0xd8] sm:$0xf] %vm1394, %v1320
  %1450 = vst.msk [vmem:[%s4 + $0xdc] sm:$0xf] %vm1394, %v1321
  %1451 = vst.msk [vmem:[%s4 + $0xe0] sm:$0xf] %vm1394, %v1322
  %1452 = vst.msk [vmem:[%s4 + $0xe4] sm:$0xf] %vm1394, %v1323
  %1453 = vst.msk [vmem:[%s4 + $0xe8] sm:$0xf] %vm1394, %v1324
  %1454 = vst.msk [vmem:[%s4 + $0xec] sm:$0xf] %vm1394, %v1325
  %1455 = vst.msk [vmem:[%s4 + $0xf0] sm:$0xf] %vm1394, %v1326
  %1456 = vst.msk [vmem:[%s4 + $0xf4] sm:$0xf] %vm1394, %v1327
  %1457 = vst.msk [vmem:[%s4 + $0xf8] sm:$0xf] %vm1394, %v1328
  %1458 = vst.msk [vmem:[%s4 + $0xfc] sm:$0xf] %vm1394, %v1329
  // Predicated region
  $region18: #{tpu_custom_call.1} parent=0 // pred_check
    _
  $region19: #{tpu_custom_call.1} parent=0 // pred_check_branch
    %1460 = sbr.rel (0) target = $region21
  $region20: #{tpu_custom_call.1} parent=0 // pred_region
    _
  $region21: #{tpu_custom_call.1} parent=0 // pred_fallthru
    _
  // Predicated region
  $region22: #{tpu_custom_call.1} parent=0 // pred_check
    _
  $region23: #{tpu_custom_call.1} parent=0 // pred_check_branch
    %1462 = sbr.rel (0) target = $region25
  $region24: #{tpu_custom_call.1} parent=0 // pred_region
    _
  $region25: #{tpu_custom_call.1} parent=0 // pred_fallthru
    _

</llo_original>
